<compile_context>
chip_gen: v7x
topology: tpu7x:2x2x1
jax: 0.10.0
libtpu: 0.0.40
codegen_flags: <defaults>
</compile_context>

<pallas_src>
import jax
import jax.numpy as jnp
from jax.experimental import pallas as pl
from jax.experimental.pallas import tpu as pltpu


# --------------------------------------------------------------------------- #
# Kernel
# --------------------------------------------------------------------------- #
def _panet_mlp_kernel(x_ref, w6_ref, b6_ref, w7_ref, b7_ref, o_ref,
                      fc6_acc, max_acc):
    """Grid: (row tile n [parallel], level l [arbitrary], K tile k [arbitrary]).

    x_ref  : [TN, TK]  f32   pooled+flattened features (level l, row tile n, K tile k)
    w6_ref : [TK, H]   bf16  fc6 weight slab of level l, K tile k (pre-cast)
    b6_ref : [1, H]    f32   fc6 bias of level l
    w7_ref : [H, H]    bf16  fc7 weight (constant block, single-buffered)
    b7_ref : [1, H]    f32   fc7 bias   (constant block, single-buffered)
    o_ref  : [TN, H]   f32   output row tile (written at level==last, k==last)
    fc6_acc: [TN, H]   f32   fc6 K-accumulator (VMEM scratch)
    max_acc: [TN, H]   bf16  running elementwise-max over levels (VMEM scratch)
    """
    lvl = pl.program_id(1)
    kk = pl.program_id(2)
    n_lvl = pl.num_programs(1)
    n_k = pl.num_programs(2)

    @pl.when(kk == 0)
    def _():
        fc6_acc[...] = jnp.zeros_like(fc6_acc)

    @pl.when(jnp.logical_and(lvl == 0, kk == 0))
    def _():
        # ReLU guarantees h >= 0, so zeros are the identity for the level max:
        # one init + an unconditional max below replaces the lvl==0 / lvl>0
        # predicated pair.
        max_acc[...] = jnp.zeros_like(max_acc)

    # fc6[lvl] partial matmul on the MXU; activations are cast to the weight
    # dtype *in-kernel* (no wrapper-side HBM cast pass), f32 accumulation.
    fc6_acc[...] += jnp.dot(x_ref[...].astype(w6_ref.dtype), w6_ref[...],
                            preferred_element_type=jnp.float32)

    @pl.when(kk == n_k - 1)
    def _():
        h = jnp.maximum(fc6_acc[...] + b6_ref[...], 0.0)
        # bf16 rounding is monotone -> cast-then-max == max-then-cast, and the
        # fc7 matmul consumes bf16 anyway; a bf16 scratch halves its VMEM and
        # the per-level fold traffic.
        max_acc[...] = jnp.maximum(max_acc[...], h.astype(max_acc.dtype))

        # fc7 epilogue: once per row tile, hidden under the next tile's DMAs.
        @pl.when(lvl == n_lvl - 1)
        def _():
            y = jnp.dot(max_acc[...], w7_ref[...],
                        preferred_element_type=jnp.float32)
            o_ref[...] = jnp.maximum(y + b7_ref[...], 0.0).astype(o_ref.dtype)


# --------------------------------------------------------------------------- #
# Tiling / hardware helpers
# --------------------------------------------------------------------------- #
def _round_up(x, m):
    return ((x + m - 1) // m) * m


def _tpu_vmem_capacity_bytes():
    """Physical VMEM per TensorCore; conservative (v7x = 64 MiB) on failure."""
    try:
        return int(pltpu.get_tpu_info().vmem_capacity_bytes)
    except Exception:  # pragma: no cover - info query unavailable
        return 64 * 1024 * 1024


def _choose_tn(n, target=512, quantum=16, min_row_tiles=4):
    """Row-tile size: big (target 512) to cut w6 HBM re-streaming, multiple of
    16 for packed bf16 loads, but capped so >= min_row_tiles row tiles exist
    when N is large enough (keeps v7x megacore's 'parallel' axis balanced)."""
    n_pad = _round_up(n, quantum)
    t = min(target, n_pad)
    if n_pad >= min_row_tiles * quantum:
        t = min(t, _round_up(pl.cdiv(n_pad, min_row_tiles), quantum))
    return max(quantum, (t // quantum) * quantum)


def _choose_tk(d_pad, target):
    """Largest multiple of 128 that divides the (128-padded) contraction dim
    and is <= target. Never falls back to the full D_in, so the w6 slab stays
    small enough to double-buffer inside v7x's 64 MiB VMEM."""
    t = (min(target, d_pad) // 128) * 128
    while t >= 128:
        if d_pad % t == 0:
            return t
        t -= 128
    return 128


def _const_block_spec(block_shape, index_map):
    """BlockSpec for constant-index blocks (fc7 weight/bias): single-buffered,
    since the second pipeline buffer would be dead weight (~2 MiB bf16 at
    H=1024) -- matters inside v7x's 64 MiB VMEM. Falls back to the default
    double-buffered spec on JAX versions without pipeline_mode."""
    try:
        return pl.BlockSpec(block_shape, index_map,
                            pipeline_mode=pl.Buffered(1))
    except TypeError:  # pragma: no cover - older BlockSpec signature
        return pl.BlockSpec(block_shape, index_map)


# --------------------------------------------------------------------------- #
# Param prep (run ONCE at model init / param load, not per forward call)
# --------------------------------------------------------------------------- #
def prepare_panet_mlp_params(w6, b6, w7, b7, compute_dtype=jnp.bfloat16):
    """Cast fc6/fc7 weights to the MXU compute dtype and zero-pad the fc6
    contraction dim to a multiple of 128. Hoisting this out of the per-call
    path removes a full HBM read(f32)+write(bf16) pass over ~L*D_in*H weights
    on every forward."""
    L, D_in, H = w6.shape
    D_pad = _round_up(D_in, 128)
    w6c = w6.astype(compute_dtype)
    if D_pad != D_in:
        w6c = jnp.pad(w6c, ((0, 0), (0, D_pad - D_in), (0, 0)))
    return {
        "w6": w6c,                                        # [L, D_pad, H] bf16
        "b6": b6.reshape(L, 1, H).astype(jnp.float32),    # [L, 1, H]     f32
        "w7": w7.astype(compute_dtype),                   # [H, H]        bf16
        "b7": b7.reshape(1, H).astype(jnp.float32),       # [1, H]        f32
        "d_in": D_in,
    }


# --------------------------------------------------------------------------- #
# Forward wrapper (hot path)
# --------------------------------------------------------------------------- #
def panet_box_feature_extractor(pooled_levels, params, *, tn=None, tk=None):
    """
    pooled_levels: [L, N, C, R, R] per-level PANet pooler output (NCHW per level)
    params       : output of prepare_panet_mlp_params
    returns      : [N, H] float32
    """
    L, N, C, R, R2 = pooled_levels.shape
    assert R == R2
    D_in = C * R * R
    w6, b6, w7, b7 = params["w6"], params["b6"], params["w7"], params["b7"]
    assert params["d_in"] == D_in and w6.shape[0] == L
    D_pad, H = w6.shape[1], w6.shape[2]

    vmem_cap = _tpu_vmem_capacity_bytes()
    if tn is None:
        tn = _choose_tn(N)
    if tk is None:
        # 128 MiB VMEM parts (v5e/v6e) take a bigger K slab (fewer fc6_acc
        # read-modify-write passes + fewer grid steps); keep 2048 on v7x.
        tk = _choose_tk(D_pad, target=4096 if vmem_cap >= 100 * 1024 * 1024
                        else 2048)
    assert D_pad % tk == 0 and tk % 128 == 0

    # Pad ROI count to a TN multiple (N is data-dependent in detection) and
    # the contraction dim to the padded weight length; padded rows are sliced
    # off, padded K columns are zeros (contribute nothing to the dot).
    N_pad = _round_up(N, tn)

    # Flatten NCHW -> [L, N, D_in] (same order as torch .view(N, -1) on
    # contiguous NCHW). NOTE: no dtype cast here -- activations stream to the
    # kernel in their native dtype and are cast in-kernel.
    x = pooled_levels.reshape(L, N, D_in)
    if N_pad != N or D_pad != D_in:
        x = jnp.pad(x, ((0, 0), (0, N_pad - N), (0, D_pad - D_in)))

    grid = (N_pad // tn, L, D_pad // tk)

    out = pl.pallas_call(
        _panet_mlp_kernel,
        out_shape=jax.ShapeDtypeStruct((N_pad, H), jnp.float32),
        grid_spec=pltpu.PrefetchScalarGridSpec(
            num_scalar_prefetch=0,
            grid=grid,
            in_specs=[
                # pooled features: level l, row tile n, K tile k (native dtype)
                pl.BlockSpec((None, tn, tk), lambda n, l, k: (l, n, k)),
                # fc6 weight slab and bias of level l (pre-cast at init)
                pl.BlockSpec((None, tk, H), lambda n, l, k: (l, k, 0)),
                # b6 index changes with level and is tiny (H f32), so the
                # default double buffer stays (prefetches next level's bias).
                pl.BlockSpec((None, 1, H), lambda n, l, k: (l, 0, 0)),
                # fc7 params: constant block index -> fetched from HBM once,
                # single-buffered (no dead second buffer).
                _const_block_spec((H, H), lambda n, l, k: (0, 0)),
                _const_block_spec((1, H), lambda n, l, k: (0, 0)),
            ],
            out_specs=pl.BlockSpec((tn, H), lambda n, l, k: (n, 0)),
            scratch_shapes=[
                pltpu.VMEM((tn, H), jnp.float32),    # fc6 K accumulator
                pltpu.VMEM((tn, H), jnp.bfloat16),   # level-max accumulator
            ],
        ),
        compiler_params=pltpu.CompilerParams(
            # Row tiles are independent -> parallel (2x on v7x megacore);
            # level and K axes carry the scratch accumulators -> arbitrary.
            dimension_semantics=("parallel", "arbitrary", "arbitrary"),
            # ~96 MiB on 128-MiB parts (v5e/v6e), ~48 MiB on v7x's 64 MiB.
            vmem_limit_bytes=min(96 * 1024 * 1024, (vmem_cap * 3) // 4),
        ),
    )(x, w6, b6, w7, b7)

    return out[:N] if N_pad != N else out


# --------------------------------------------------------------------------- #
# Pure-JAX reference (mirrors the kernel's bf16-in / f32-accumulate math)
# --------------------------------------------------------------------------- #
def _reference(pooled_levels, w6, b6, w7, b7, compute_dtype=jnp.bfloat16):
    L, N, C, R, _ = pooled_levels.shape
    x = pooled_levels.reshape(L, N, -1).astype(compute_dtype)
    h = jnp.einsum("lnd,ldh->lnh", x, w6.astype(compute_dtype),
                   preferred_element_type=jnp.float32) + b6[:, None, :]
    h = jnp.maximum(h, 0.0)
    m = jnp.max(h, axis=0)
    y = jnp.dot(m.astype(compute_dtype), w7.astype(compute_dtype),
                preferred_element_type=jnp.float32) + b7
    return jnp.maximum(y, 0.0)


if __name__ == "__main__":
    # Small config consistent with the module:
    #   in_channels C = 4, POOLER_RESOLUTION R = 8 -> input_size D_in = 256
    #   MLP_HEAD_DIM H = 128 (lane-dense output), num_levels L = 4.
    #   N = 18 ROIs (not a tile multiple, to exercise the row-padding path).
    L, N, C, R, H = 4, 18, 4, 8, 128
    D_in = C * R * R

    key = jax.random.PRNGKey(0)
    k_x, k_w6, k_b6, k_w7, k_b7 = jax.random.split(key, 5)

    # Pooled per-level ROI features (what self.pooler would return, NCHW).
    pooled = jax.random.normal(k_x, (L, N, C, R, R), dtype=jnp.float32)

    # fc6[i]: D_in -> H per level (weights stored [D_in, H]); fc7: H -> H.
    w6 = jax.random.normal(k_w6, (L, D_in, H), dtype=jnp.float32) * (1.0 / jnp.sqrt(D_in))
    b6 = jax.random.normal(k_b6, (L, H), dtype=jnp.float32) * 0.01
    w7 = jax.random.normal(k_w7, (H, H), dtype=jnp.float32) * (1.0 / jnp.sqrt(H))
    b7 = jax.random.normal(k_b7, (H,), dtype=jnp.float32) * 0.01

    # One-time param prep (model init), not part of the per-call hot path.
    params = prepare_panet_mlp_params(w6, b6, w7, b7)

    ref = _reference(pooled, w6, b6, w7, b7)

    # 1) Forced small tiles: exercises the full (parallel N, level, K) grid
    #    plus row padding: 3 row tiles x 4 levels x 2 K tiles = 24 steps.
    out_small = panet_box_feature_extractor(pooled, params, tn=8, tk=128)
    out_small = jax.block_until_ready(out_small)
    assert out_small.shape == (N, H)
    assert jnp.allclose(out_small, ref, atol=2e-2, rtol=2e-2), "small-tile mismatch"

    # 2) Auto tile selection (default production path).
    out_auto = panet_box_feature_extractor(pooled, params)
    out_auto = jax.block_until_ready(out_auto)
    assert out_auto.shape == (N, H)
    assert jnp.allclose(out_auto, ref, atol=2e-2, rtol=2e-2), "auto-tile mismatch"

    print("KERNEL_OK")
</pallas_src>

<mosaic_0001>
module attributes {stable_mosaic.version = 11 : i64} {
  func.func @_panet_mlp_kernel(%arg0: i32, %arg1: i32, %arg2: i32, %arg3: memref<1x8x128xf32, #tpu.memory_space<vmem>>, %arg4: memref<1x128x128xbf16, #tpu.memory_space<vmem>>, %arg5: memref<1x1x128xf32, #tpu.memory_space<vmem>>, %arg6: memref<128x128xbf16, #tpu.memory_space<vmem>>, %arg7: memref<1x128xf32, #tpu.memory_space<vmem>>, %arg8: memref<8x128xf32, #tpu.memory_space<vmem>>, %arg9: memref<8x128xf32, #tpu.memory_space<vmem>>, %arg10: memref<8x128xbf16, #tpu.memory_space<vmem>>) attributes {dimension_semantics = [#tpu.dimension_semantics<parallel>, #tpu.dimension_semantics<arbitrary>, #tpu.dimension_semantics<arbitrary>], iteration_bounds = array<i64: 3, 4, 2>, scalar_prefetch = 0 : i64, scratch_operands = 2 : i64, tpu.core_type = #tpu.core_type<tc>, window_params = [{transform_indices = @transform_0, window_bounds = array<i64: 1, 8, 128>}, {transform_indices = @transform_1, window_bounds = array<i64: 1, 128, 128>}, {transform_indices = @transform_2, window_bounds = array<i64: 1, 1, 128>}, {pipeline_mode = #tpu.pipeline_mode<synchronous>, transform_indices = @transform_3, window_bounds = array<i64: 128, 128>}, {pipeline_mode = #tpu.pipeline_mode<synchronous>, transform_indices = @transform_4, window_bounds = array<i64: 1, 128>}, {transform_indices = @transform_5, window_bounds = array<i64: 8, 128>}]} {
    %c0_i32 = arith.constant 0 : i32
    %0 = arith.cmpi eq, %arg2, %c0_i32 : i32
    %1 = arith.extui %0 : i1 to i32
    %c0_i32_0 = arith.constant 0 : i32
    %2 = arith.cmpi ne, %1, %c0_i32_0 : i32
    scf.if %2 {
      %cst_14 = arith.constant 0.000000e+00 : f32
      %20 = vector.broadcast %cst_14 : f32 to vector<8x128xf32>
      %c0_15 = arith.constant 0 : index
      %c0_16 = arith.constant 0 : index
      %21 = vector.load %arg9[%c0_15, %c0_16] : memref<8x128xf32, #tpu.memory_space<vmem>>, vector<8x128xf32>
      tpu.vector_store %arg9[%c0_15, %c0_16], %20 {strides = array<i32>} : memref<8x128xf32, #tpu.memory_space<vmem>>, vector<8x128xf32>,
    } else {
    }
    %c0_i32_1 = arith.constant 0 : i32
    %3 = arith.cmpi eq, %arg1, %c0_i32_1 : i32
    %c0_i32_2 = arith.constant 0 : i32
    %4 = arith.cmpi eq, %arg2, %c0_i32_2 : i32
    %5 = arith.andi %3, %4 : i1
    %6 = arith.extui %5 : i1 to i32
    %c0_i32_3 = arith.constant 0 : i32
    %7 = arith.cmpi ne, %6, %c0_i32_3 : i32
    scf.if %7 {
      %cst_14 = arith.constant 0.000000e+00 : bf16
      %20 = vector.broadcast %cst_14 : bf16 to vector<8x128xbf16>
      %c0_15 = arith.constant 0 : index
      %c0_16 = arith.constant 0 : index
      %21 = vector.load %arg10[%c0_15, %c0_16] : memref<8x128xbf16, #tpu.memory_space<vmem>>, vector<8x128xbf16>
      tpu.vector_store %arg10[%c0_15, %c0_16], %20 {strides = array<i32>} : memref<8x128xbf16, #tpu.memory_space<vmem>>, vector<8x128xbf16>,
    } else {
    }
    %c0 = arith.constant 0 : index
    %c0_4 = arith.constant 0 : index
    %8 = vector.load %arg9[%c0, %c0_4] : memref<8x128xf32, #tpu.memory_space<vmem>>, vector<8x128xf32>
    %c0_5 = arith.constant 0 : index
    %c0_6 = arith.constant 0 : index
    %c0_7 = arith.constant 0 : index
    %9 = vector.load %arg3[%c0_5, %c0_6, %c0_7] : memref<1x8x128xf32, #tpu.memory_space<vmem>>, vector<1x8x128xf32>
    %10 = vector.shape_cast %9 : vector<1x8x128xf32> to vector<8x128xf32>
    %11 = arith.truncf %10 : vector<8x128xf32> to vector<8x128xbf16>
    %c0_8 = arith.constant 0 : index
    %c0_9 = arith.constant 0 : index
    %c0_10 = arith.constant 0 : index
    %12 = vector.load %arg4[%c0_8, %c0_9, %c0_10] : memref<1x128x128xbf16, #tpu.memory_space<vmem>>, vector<1x128x128xbf16>
    %13 = vector.shape_cast %12 : vector<1x128x128xbf16> to vector<128x128xbf16>
    %cst = arith.constant dense<0.000000e+00> : vector<8x128xf32>
    %14 = tpu.matmul %11, %13, %cst {dimension_numbers = #tpu.dot_dimension_numbers<[1], [0], [0], [1], [0, 0, 1, 1], [], []>} : vector<8x128xbf16>, vector<128x128xbf16>, vector<8x128xf32> -> vector<8x128xf32>
    %15 = arith.addf %8, %14 : vector<8x128xf32>
    %c0_11 = arith.constant 0 : index
    %c0_12 = arith.constant 0 : index
    %16 = vector.load %arg9[%c0_11, %c0_12] : memref<8x128xf32, #tpu.memory_space<vmem>>, vector<8x128xf32>
    tpu.vector_store %arg9[%c0_11, %c0_12], %15 {strides = array<i32>} : memref<8x128xf32, #tpu.memory_space<vmem>>, vector<8x128xf32>,
    %c1_i32 = arith.constant 1 : i32
    %17 = arith.cmpi eq, %arg2, %c1_i32 : i32
    %18 = arith.extui %17 : i1 to i32
    %c0_i32_13 = arith.constant 0 : i32
    %19 = arith.cmpi ne, %18, %c0_i32_13 : i32
    scf.if %19 {
      %c0_14 = arith.constant 0 : index
      %c0_15 = arith.constant 0 : index
      %20 = vector.load %arg9[%c0_14, %c0_15] : memref<8x128xf32, #tpu.memory_space<vmem>>, vector<8x128xf32>
      %c0_16 = arith.constant 0 : index
      %c0_17 = arith.constant 0 : index
      %c0_18 = arith.constant 0 : index
      %21 = vector.load %arg5[%c0_16, %c0_17, %c0_18] : memref<1x1x128xf32, #tpu.memory_space<vmem>>, vector<1x1x128xf32>
      %22 = vector.shape_cast %21 : vector<1x1x128xf32> to vector<1x128xf32>
      %23 = vector.broadcast %22 : vector<1x128xf32> to vector<8x128xf32>
      %24 = arith.addf %20, %23 : vector<8x128xf32>
      %cst_19 = arith.constant 0.000000e+00 : f32
      %25 = vector.broadcast %cst_19 : f32 to vector<8x128xf32>
      %26 = arith.maximumf %24, %25 : vector<8x128xf32>
      %c0_20 = arith.constant 0 : index
      %c0_21 = arith.constant 0 : index
      %27 = vector.load %arg10[%c0_20, %c0_21] : memref<8x128xbf16, #tpu.memory_space<vmem>>, vector<8x128xbf16>
      %28 = arith.truncf %26 : vector<8x128xf32> to vector<8x128xbf16>
      %29 = arith.maximumf %27, %28 : vector<8x128xbf16>
      %c0_22 = arith.constant 0 : index
      %c0_23 = arith.constant 0 : index
      %30 = vector.load %arg10[%c0_22, %c0_23] : memref<8x128xbf16, #tpu.memory_space<vmem>>, vector<8x128xbf16>
      tpu.vector_store %arg10[%c0_22, %c0_23], %29 {strides = array<i32>} : memref<8x128xbf16, #tpu.memory_space<vmem>>, vector<8x128xbf16>,
      %c3_i32 = arith.constant 3 : i32
      %31 = arith.cmpi eq, %arg1, %c3_i32 : i32
      %32 = arith.extui %31 : i1 to i32
      %c0_i32_24 = arith.constant 0 : i32
      %33 = arith.cmpi ne, %32, %c0_i32_24 : i32
      scf.if %33 {
        %c0_25 = arith.constant 0 : index
        %c0_26 = arith.constant 0 : index
        %34 = vector.load %arg10[%c0_25, %c0_26] : memref<8x128xbf16, #tpu.memory_space<vmem>>, vector<8x128xbf16>
        %c0_27 = arith.constant 0 : index
        %c0_28 = arith.constant 0 : index
        %35 = vector.load %arg6[%c0_27, %c0_28] : memref<128x128xbf16, #tpu.memory_space<vmem>>, vector<128x128xbf16>
        %cst_29 = arith.constant dense<0.000000e+00> : vector<8x128xf32>
        %36 = tpu.matmul %34, %35, %cst_29 {dimension_numbers = #tpu.dot_dimension_numbers<[1], [0], [0], [1], [0, 0, 1, 1], [], []>} : vector<8x128xbf16>, vector<128x128xbf16>, vector<8x128xf32> -> vector<8x128xf32>
        %c0_30 = arith.constant 0 : index
        %c0_31 = arith.constant 0 : index
        %37 = vector.load %arg7[%c0_30, %c0_31] : memref<1x128xf32, #tpu.memory_space<vmem>>, vector<1x128xf32>
        %38 = vector.broadcast %37 : vector<1x128xf32> to vector<8x128xf32>
        %39 = arith.addf %36, %38 : vector<8x128xf32>
        %cst_32 = arith.constant 0.000000e+00 : f32
        %40 = vector.broadcast %cst_32 : f32 to vector<8x128xf32>
        %41 = arith.maximumf %39, %40 : vector<8x128xf32>
        %c0_33 = arith.constant 0 : index
        %c0_34 = arith.constant 0 : index
        %42 = vector.load %arg8[%c0_33, %c0_34] : memref<8x128xf32, #tpu.memory_space<vmem>>, vector<8x128xf32>
        tpu.vector_store %arg8[%c0_33, %c0_34], %41 {strides = array<i32>} : memref<8x128xf32, #tpu.memory_space<vmem>>, vector<8x128xf32>,
      } else {
      }
    } else {
    }
    return
  }
  func.func @transform_0(%arg0: i32, %arg1: i32, %arg2: i32) -> (i32, i32, i32) {
    %c0_i32 = arith.constant 0 : i32
    return %arg1, %arg0, %arg2 : i32, i32, i32
  }
  func.func @transform_1(%arg0: i32, %arg1: i32, %arg2: i32) -> (i32, i32, i32) {
    %c0_i32 = arith.constant 0 : i32
    %c0_i32_0 = arith.constant 0 : i32
    return %arg1, %arg2, %c0_i32 : i32, i32, i32
  }
  func.func @transform_2(%arg0: i32, %arg1: i32, %arg2: i32) -> (i32, i32, i32) {
    %c0_i32 = arith.constant 0 : i32
    %c0_i32_0 = arith.constant 0 : i32
    %c0_i32_1 = arith.constant 0 : i32
    return %arg1, %c0_i32, %c0_i32_0 : i32, i32, i32
  }
  func.func @transform_3(%arg0: i32, %arg1: i32, %arg2: i32) -> (i32, i32) {
    %c0_i32 = arith.constant 0 : i32
    %c0_i32_0 = arith.constant 0 : i32
    %c0_i32_1 = arith.constant 0 : i32
    return %c0_i32, %c0_i32_0 : i32, i32
  }
  func.func @transform_4(%arg0: i32, %arg1: i32, %arg2: i32) -> (i32, i32) {
    %c0_i32 = arith.constant 0 : i32
    %c0_i32_0 = arith.constant 0 : i32
    %c0_i32_1 = arith.constant 0 : i32
    return %c0_i32, %c0_i32_0 : i32, i32
  }
  func.func @transform_5(%arg0: i32, %arg1: i32, %arg2: i32) -> (i32, i32) {
    %c0_i32 = arith.constant 0 : i32
    %c0_i32_0 = arith.constant 0 : i32
    return %arg0, %c0_i32 : i32, i32
  }
}

</mosaic_0001>

<llo_original>
// kernel: tpu_custom_call.1
$region0: #{tpu_custom_call.1}
  #allocation0 [shape = 'u32[]', space=smem, size = 0x4, offset = 0x4, fixed_abs, tag = 'smem constant byte address 0x4 - core index']
  #allocation1 [shape = 'u32[144,128]{1,0:T(1,128)}', space=vmem, size = 0x12000, scoped, tag = 'internal scratch']
  #allocation2 [shape = 'f32[8,128]{1,0:T(8,128)}', space=vmem, size = 0x1000, scoped, tag = 'scratch operand']
  #allocation3 [shape = 'bf16[8,128]{1,0:T(8,128)(2,1)}', space=vmem, size = 0x800, scoped, tag = 'scratch operand']
  %s0 = inlined_call_operand.hbm [shape: f32[4,24,256], index: 0, kind: input, shape index: {}]
  %s1 = inlined_call_operand.hbm [shape: bf16[4,256,128], index: 1, kind: input, shape index: {}]
  %s2 = inlined_call_operand.vmem [shape: f32[4,1,128], index: 2, kind: input, shape index: {}]
  %s3 = inlined_call_operand.hbm [shape: bf16[128,128], index: 3, kind: input, shape index: {}]
  %s4 = inlined_call_operand.vmem [shape: f32[1,128], index: 4, kind: input, shape index: {}]
  %s5 = inlined_call_operand.hbm [shape: f32[24,128], index: 5, kind: output, shape index: {}]
  %s6 = sld [smem:[#allocation0]]
  $region81: #{tpu_custom_call.1} parent=0
    _
  %s8 = ssub.s32 1, %s6
  %s9 = scalar_select 0, %s8, %s6
  $region1: #{tpu_custom_call.1} parent=0
    #allocation4 [shape = 'u8[8192]{0}', space=vmem, size = 0x2000, scoped, tag = 'input window, operand 0']
    #allocation5 [shape = 's32[2]{0}', space=sflag, size = 0x8, scoped, tag = 'scoped memory for tpu_custom_call.1']
    #allocation6 [shape = 's32[2]{0}', space=sflag, size = 0x8, scoped, tag = 'scoped memory for tpu_custom_call.1']
    #allocation7 [shape = 'u8[65536]{0}', space=vmem, size = 0x10000, scoped, tag = 'input window, operand 1']
    #allocation8 [shape = 's32[2]{0}', space=sflag, size = 0x8, scoped, tag = 'scoped memory for tpu_custom_call.1']
    #allocation9 [shape = 'u8[32768]{0}', space=vmem, size = 0x8000, scoped, tag = 'input window, operand 3, single buffered']
    #allocation10 [shape = 'u8[8192]{0}', space=vmem, size = 0x2000, scoped, tag = 'output window, operand 0']
    %10 = vsyncpa [#allocation5], 0
    %s11 = scalar_lea.sflag [#allocation5], 1
    %12 = vsyncpa %s11, 0
    %13 = vsyncpa [#allocation8], 0
    %s14 = scalar_lea.sflag [#allocation8], 1
    %15 = vsyncpa %s14, 0
    %16 = vsyncpa [#allocation6], 0
    %s17 = scalar_lea.sflag [#allocation6], 1
    %18 = vsyncpa %s17, 0
    loop: start=0, step=1, limit=26
    $region2: #{tpu_custom_call.1} parent=1 // loop_pre_header
      _
    $region3: #{tpu_custom_call.1} parent=1 // loop_header
      %s20 = sphi 0, %s24
      %p21 = scmp.ge.s32.totalorder %s20, 26
      %s27 = sphi 0, %s46
      %s28 = sphi 0, %s42
      %s29 = sphi 0, %s38
      %s30 = sphi 0, %s27
      %s31 = sphi 0, %s28
      %s32 = sphi 0, %s29
      %s33 = sphi 0, %s30
      %s34 = sphi 0, %s31
      %s35 = sphi 0, %s32
      %s53 = sphi 0, %s55
      %s56 = sphi 0, %s53
      %s57 = sphi 0, %s56
      %s73 = sphi 0, %s57
      %s81 = sphi 0, %s83
      %s84 = sphi 0, %s81
      %s85 = sphi 0, %s84
      %s101 = sphi 0, %s85
      %s107 = sphi 0, %s109
      %s110 = sphi 0, %s107
      %s111 = sphi 0, %s110
      %s127 = sphi 0, %s111
      %s131 = sphi 0, %s131
      %s133 = sphi 0, %s131
      %s134 = sphi 0, %s133
      %s148 = sphi 0, %s134
      %s152 = sphi 0, %s152
      %s154 = sphi 0, %s152
      %s155 = sphi 0, %s154
      %s169 = sphi 0, %s155
      %s175 = sphi 0, %s177
      %s178 = sphi 0, %s175
      %s179 = sphi 0, %s178
      %s195 = sphi 0, %s179
    $region4: #{tpu_custom_call.1} parent=1 // loop_header_branch
      %23 = sbr.rel (%p21) target = $region8
    $region5: #{tpu_custom_call.1} parent=1 // loop_body
      %s25 = ssub.s32 %s20, 1
      %s26 = ssub.s32 %s20, 2
      %s36 = sadd.s32 1, %s29
      %p37 = scmp.ge.s32.totalorder %s36, 2
      %s38 = scalar_select %p37, 0, %s36
      %s39 = sadd.s32 1, %s28
      %s40 = scalar_select %p37, %s39, %s28
      %p41 = scmp.ge.s32.totalorder %s40, 4
      %s42 = scalar_select %p41, 0, %s40
      %s43 = sadd.s32 1, %s27
      %s44 = scalar_select %p41, %s43, %s27
      %p45 = scmp.ge.s32.totalorder %s44, 3
      %s46 = scalar_select %p45, 0, %s44
      %s47 = ssub.s32 %s28, %s42
      %s48 = ssub.s32 %s27, %s46
      %s49 = sor.u32 %s47, %s48
      %s50 = ssub.s32 %s29, %s38
      %s51 = sor.u32 %s49, %s50
      %p52 = scmp.eq.s32.totalorder %s51, 0
      %s54 = sadd.s32 %s53, 1
      %s55 = scalar_select %p52, %s53, %s54
      %p58 = pneg %p52
      %p59 = scmp.eq.s32.totalorder %s20, 23
      %p60 = por %p58, %p59
      %p61 = scmp.ne.s32.totalorder %s53, %s56
      %p62 = scmp.eq.s32.totalorder %s20, 0
      %p63 = por %p61, %p62
      %p64 = scmp.ne.s32.totalorder %s53, %s56
      %p65 = scmp.eq.s32.totalorder %s25, 23
      %p66 = por %p64, %p65
      %p67 = scmp.ne.s32.totalorder %s56, %s57
      %p68 = scmp.eq.s32.totalorder %s25, 0
      %p69 = por %p67, %p68
      %p70 = scmp.ne.s32.totalorder %s56, %s57
      %p71 = scmp.eq.s32.totalorder %s26, 23
      %p72 = por %p70, %p71
      %p74 = scmp.ne.s32.totalorder %s57, %s73
      %p75 = scmp.eq.s32.totalorder %s26, 0
      %p76 = por %p74, %p75
      %s77 = ssub.s32 %s28, %s42
      %s78 = ssub.s32 %s29, %s38
      %s79 = sor.u32 %s77, %s78
      %p80 = scmp.eq.s32.totalorder %s79, 0
      %s82 = sadd.s32 %s81, 1
      %s83 = scalar_select %p80, %s81, %s82
      %p86 = pneg %p80
      %p87 = scmp.eq.s32.totalorder %s20, 23
      %p88 = por %p86, %p87
      %p89 = scmp.ne.s32.totalorder %s81, %s84
      %p90 = scmp.eq.s32.totalorder %s20, 0
      %p91 = por %p89, %p90
      %p92 = scmp.ne.s32.totalorder %s81, %s84
      %p93 = scmp.eq.s32.totalorder %s25, 23
      %p94 = por %p92, %p93
      %p95 = scmp.ne.s32.totalorder %s84, %s85
      %p96 = scmp.eq.s32.totalorder %s25, 0
      %p97 = por %p95, %p96
      %p98 = scmp.ne.s32.totalorder %s84, %s85
      %p99 = scmp.eq.s32.totalorder %s26, 23
      %p100 = por %p98, %p99
      %p102 = scmp.ne.s32.totalorder %s85, %s101
      %p103 = scmp.eq.s32.totalorder %s26, 0
      %p104 = por %p102, %p103
      %s105 = ssub.s32 %s28, %s42
      %p106 = scmp.eq.s32.totalorder %s105, 0
      %s108 = sadd.s32 %s107, 1
      %s109 = scalar_select %p106, %s107, %s108
      %p112 = pneg %p106
      %p113 = scmp.eq.s32.totalorder %s20, 23
      %p114 = por %p112, %p113
      %p115 = scmp.ne.s32.totalorder %s107, %s110
      %p116 = scmp.eq.s32.totalorder %s20, 0
      %p117 = por %p115, %p116
      %p118 = scmp.ne.s32.totalorder %s107, %s110
      %p119 = scmp.eq.s32.totalorder %s25, 23
      %p120 = por %p118, %p119
      %p121 = scmp.ne.s32.totalorder %s110, %s111
      %p122 = scmp.eq.s32.totalorder %s25, 0
      %p123 = por %p121, %p122
      %p124 = scmp.ne.s32.totalorder %s110, %s111
      %p125 = scmp.eq.s32.totalorder %s26, 23
      %p126 = por %p124, %p125
      %p128 = scmp.ne.s32.totalorder %s111, %s127
      %p129 = scmp.eq.s32.totalorder %s26, 0
      %p130 = por %p128, %p129
      %s132 = sadd.s32 %s131, 1
      %p135 = scmp.eq.s32.totalorder %s20, 23
      %p136 = scmp.ne.s32.totalorder %s131, %s133
      %p137 = scmp.eq.s32.totalorder %s20, 0
      %p138 = por %p136, %p137
      %p139 = scmp.ne.s32.totalorder %s131, %s133
      %p140 = scmp.eq.s32.totalorder %s25, 23
      %p141 = por %p139, %p140
      %p142 = scmp.ne.s32.totalorder %s133, %s134
      %p143 = scmp.eq.s32.totalorder %s25, 0
      %p144 = por %p142, %p143
      %p145 = scmp.ne.s32.totalorder %s133, %s134
      %p146 = scmp.eq.s32.totalorder %s26, 23
      %p147 = por %p145, %p146
      %p149 = scmp.ne.s32.totalorder %s134, %s148
      %p150 = scmp.eq.s32.totalorder %s26, 0
      %p151 = por %p149, %p150
      %s153 = sadd.s32 %s152, 1
      %p156 = scmp.eq.s32.totalorder %s20, 23
      %p157 = scmp.ne.s32.totalorder %s152, %s154
      %p158 = scmp.eq.s32.totalorder %s20, 0
      %p159 = por %p157, %p158
      %p160 = scmp.ne.s32.totalorder %s152, %s154
      %p161 = scmp.eq.s32.totalorder %s25, 23
      %p162 = por %p160, %p161
      %p163 = scmp.ne.s32.totalorder %s154, %s155
      %p164 = scmp.eq.s32.totalorder %s25, 0
      %p165 = por %p163, %p164
      %p166 = scmp.ne.s32.totalorder %s154, %s155
      %p167 = scmp.eq.s32.totalorder %s26, 23
      %p168 = por %p166, %p167
      %p170 = scmp.ne.s32.totalorder %s155, %s169
      %p171 = scmp.eq.s32.totalorder %s26, 0
      %p172 = por %p170, %p171
      %s173 = ssub.s32 %s27, %s46
      %p174 = scmp.eq.s32.totalorder %s173, 0
      %s176 = sadd.s32 %s175, 1
      %s177 = scalar_select %p174, %s175, %s176
      %p180 = pneg %p174
      %p181 = scmp.eq.s32.totalorder %s20, 23
      %p182 = por %p180, %p181
      %p183 = scmp.ne.s32.totalorder %s175, %s178
      %p184 = scmp.eq.s32.totalorder %s20, 0
      %p185 = por %p183, %p184
      %p186 = scmp.ne.s32.totalorder %s175, %s178
      %p187 = scmp.eq.s32.totalorder %s25, 23
      %p188 = por %p186, %p187
      %p189 = scmp.ne.s32.totalorder %s178, %s179
      %p190 = scmp.eq.s32.totalorder %s25, 0
      %p191 = por %p189, %p190
      %p192 = scmp.ne.s32.totalorder %s178, %s179
      %p193 = scmp.eq.s32.totalorder %s26, 23
      %p194 = por %p192, %p193
      %p196 = scmp.ne.s32.totalorder %s179, %s195
      %p197 = scmp.eq.s32.totalorder %s26, 0
      %p198 = por %p196, %p197
      %p199 = scmp.le.s32.totalorder 1, %s20
      %p200 = scmp.lt.s32.totalorder %s20, 25
      %p201 = pnand %p199, %p200
      %p202 = pneg %p201
      // Predicated region
      $region9: #{tpu_custom_call.1} parent=5 // pred_check
        _
      $region10: #{tpu_custom_call.1} parent=5 // pred_check_branch
        %204 = sbr.rel (%p201) target = $region12
      $region11: #{tpu_custom_call.1} parent=5 // pred_region
        %s205 = ssub.s32 %s20, 1
        // Predicated region
        $region13: #{tpu_custom_call.1} parent=11 // pred_check
          %p206 = pneg %p144
        $region14: #{tpu_custom_call.1} parent=11 // pred_check_branch
          %208 = sbr.rel (%p206) target = $region16
        $region15: #{tpu_custom_call.1} parent=11 // pred_region
          %s210 = ssub.s32 1024, 1024
          %211 = vsyncadd [#allocation8], %s210
          %s212 = sshll.u32 [#allocation9], 4
          %s213 = int_to_ptr.vmem [resolvable:$true] %s212
          %218 = dma.hbm_to_vmem [thread:$0]  %s3, 1024, %s213, [#allocation8], 64, 64, 4
        $region16: #{tpu_custom_call.1} parent=11 // pred_fallthru
          _
        // Predicated region
        $region17: #{tpu_custom_call.1} parent=11 // pred_check
          %p219 = pneg %p165
        $region18: #{tpu_custom_call.1} parent=11 // pred_check_branch
          %221 = sbr.rel (%p219) target = $region20
        $region19: #{tpu_custom_call.1} parent=11 // pred_region
          _
        $region20: #{tpu_custom_call.1} parent=11 // pred_fallthru
          _
      $region12: #{tpu_custom_call.1} parent=5 // pred_fallthru
        _
      %p222 = scmp.lt.s32.totalorder %s20, 24
      // Predicated region
      $region21: #{tpu_custom_call.1} parent=5 // pred_check
        %p223 = pneg %p222
      $region22: #{tpu_custom_call.1} parent=5 // pred_check_branch
        %225 = sbr.rel (%p223) target = $region24
      $region23: #{tpu_custom_call.1} parent=5 // pred_region
        // Predicated region
        $region25: #{tpu_custom_call.1} parent=23 // pred_check
          %p226 = pneg %p63
        $region26: #{tpu_custom_call.1} parent=23 // pred_check_branch
          %228 = sbr.rel (%p226) target = $region28
        $region27: #{tpu_custom_call.1} parent=23 // pred_region
          %s229 = sand.u32 %s53, 1
          %s230 = scalar_lea.sflag [#allocation5], %s229
          %s231 = sand.u32 %s53, 1
          %s232 = smul.addr %s231, 8
          %s233 = scalar_lea.vmem [#allocation4], %s232
          %s235 = ssub.s32 128, 128
          %236 = vsyncadd %s230, %s235
          %s237 = smul.addr %s27, 2
          %s238 = sadd.s32 %s29, %s237
          %s239 = smul.addr %s28, 6
          %s240 = sadd.s32 %s238, %s239
          %s241 = smul.addr %s240, 128
          %s242 = scalar_lea.hbm %s0, %s241
          %s244 = sshll.u32 %s233, 4
          %s245 = int_to_ptr.vmem [resolvable:$true] %s244
          %247 = dma.hbm_to_vmem [thread:$0]  %s242, 128, %s245, %s230
        $region28: #{tpu_custom_call.1} parent=23 // pred_fallthru
          _
        // Predicated region
        $region29: #{tpu_custom_call.1} parent=23 // pred_check
          %p248 = pneg %p91
        $region30: #{tpu_custom_call.1} parent=23 // pred_check_branch
          %250 = sbr.rel (%p248) target = $region32
        $region31: #{tpu_custom_call.1} parent=23 // pred_region
          %s251 = sand.u32 %s20, 1
          %s252 = scalar_lea.sflag [#allocation8], %s251
          %s253 = sand.u32 %s81, 1
          %s254 = smul.addr %s253, 64
          %s255 = scalar_lea.vmem [#allocation7], %s254
          %s256 = smul.u32 16, %s29
          %s258 = ssub.s32 1024, 1024
          %259 = vsyncadd %s252, %s258
          %s260 = smul.addr %s28, 32
          %s261 = sadd.s32 %s256, %s260
          %s262 = smul.addr %s261, 64
          %s263 = scalar_lea.hbm %s1, %s262
          %s264 = sshll.u32 %s255, 4
          %s265 = int_to_ptr.vmem [resolvable:$true] %s264
          %270 = dma.hbm_to_vmem [thread:$0]  %s263, 1024, %s265, %s252, 64, 64, 4
        $region32: #{tpu_custom_call.1} parent=23 // pred_fallthru
          _
        // Predicated region
        $region33: #{tpu_custom_call.1} parent=23 // pred_check
          %p271 = pneg %p117
        $region34: #{tpu_custom_call.1} parent=23 // pred_check_branch
          %273 = sbr.rel (%p271) target = $region36
        $region35: #{tpu_custom_call.1} parent=23 // pred_region
          %p274 = scmp.lt.s32.totalorder %s28, 3
          %s275 = scalar_select %p274, %s28, 3
          %s276 = scalar_lea.vmem %s2, %s275
        $region36: #{tpu_custom_call.1} parent=23 // pred_fallthru
          _
      $region24: #{tpu_custom_call.1} parent=5 // pred_fallthru
        _
      %p277 = scmp.le.s32.totalorder 1, %s20
      %p278 = scmp.lt.s32.totalorder %s20, 25
      %p279 = pnand %p277, %p278
      %p280 = pneg %p279
      // Predicated region
      $region37: #{tpu_custom_call.1} parent=5 // pred_check
        _
      $region38: #{tpu_custom_call.1} parent=5 // pred_check_branch
        %282 = sbr.rel (%p279) target = $region40
      $region39: #{tpu_custom_call.1} parent=5 // pred_region
        %s283 = ssub.s32 %s20, 1
        %s284 = sand.u32 %s56, 1
        %s285 = scalar_lea.sflag [#allocation5], %s284
        %s286 = sand.u32 %s56, 1
        %s287 = smul.addr %s286, 8
        %s288 = scalar_lea.vmem [#allocation4], %s287
        // Predicated region
        $region41: #{tpu_custom_call.1} parent=39 // pred_check
          %p289 = pneg %p69
        $region42: #{tpu_custom_call.1} parent=39 // pred_check_branch
          %291 = sbr.rel (%p289) target = $region44
        $region43: #{tpu_custom_call.1} parent=39 // pred_region
          %292 = dma.done %s285, 128
        $region44: #{tpu_custom_call.1} parent=39 // pred_fallthru
          _
        %s293 = sand.u32 %s25, 1
        %s294 = scalar_lea.sflag [#allocation8], %s293
        %s295 = sand.u32 %s84, 1
        %s296 = smul.addr %s295, 64
        %s297 = scalar_lea.vmem [#allocation7], %s296
        // Predicated region
        $region45: #{tpu_custom_call.1} parent=39 // pred_check
          %p298 = pneg %p97
        $region46: #{tpu_custom_call.1} parent=39 // pred_check_branch
          %300 = sbr.rel (%p298) target = $region48
        $region47: #{tpu_custom_call.1} parent=39 // pred_region
          %301 = dma.done %s294, 1024
        $region48: #{tpu_custom_call.1} parent=39 // pred_fallthru
          _
        // Predicated region
        $region49: #{tpu_custom_call.1} parent=39 // pred_check
          %p302 = pneg %p144
        $region50: #{tpu_custom_call.1} parent=39 // pred_check_branch
          %304 = sbr.rel (%p302) target = $region52
        $region51: #{tpu_custom_call.1} parent=39 // pred_region
          %305 = dma.done [#allocation8], 1024
        $region52: #{tpu_custom_call.1} parent=39 // pred_fallthru
          _
        %s306 = sand.u32 %s56, 1
        %s307 = scalar_lea.sflag [#allocation5], %s306
        %s308 = sand.u32 %s56, 1
        %s309 = smul.addr %s308, 8
        %s310 = scalar_lea.vmem [#allocation4], %s309
        %p311 = pneg %p69
        %p312 = pneg %p66
        %s313 = sand.u32 %s25, 1
        %s314 = scalar_lea.sflag [#allocation8], %s313
        %s315 = sand.u32 %s84, 1
        %s316 = smul.addr %s315, 64
        %s317 = scalar_lea.vmem [#allocation7], %s316
        %p318 = pneg %p97
        %p319 = pneg %p94
        %p320 = scmp.lt.s32.totalorder %s31, 3
        %s321 = scalar_select %p320, %s31, 3
        %s322 = scalar_lea.vmem %s2, %s321
        %p323 = pneg %p123
        %p324 = pneg %p120
        %p325 = pneg %p144
        %p326 = pneg %p141
        %p327 = pneg %p165
        %p328 = pneg %p162
        %p329 = pneg %p191
        %p330 = pneg %p188
        %s331 = sand.u32 %s178, 1
        %s332 = scalar_lea.sflag [#allocation6], %s331
        %s333 = sand.u32 %s178, 1
        %s334 = smul.addr %s333, 8
        %s335 = scalar_lea.vmem [#allocation10], %s334
        %s336 = smul.u32 16, %s32
        %p337 = scmp.lt.s32.totalorder %s31, 3
        %s338 = scalar_select %p337, %s31, 3
        %s339 = scalar_lea.vmem %s2, %s338
        %p341 = scmp.eq.s32.totalorder %s32, 0
        // Predicated region
        $region53: #{tpu_custom_call.1} parent=39 // pred_check
          %p342 = pneg %p341
        $region54: #{tpu_custom_call.1} parent=39 // pred_check_branch
          %344 = sbr.rel (%p342) target = $region56
        $region55: #{tpu_custom_call.1} parent=39 // pred_region
          %345 = vst [vmem:[#allocation2] sm:$0xff] 0.0
        $region56: #{tpu_custom_call.1} parent=39 // pred_fallthru
          _
        %p346 = scmp.eq.s32.totalorder %s31, 0
        %p347 = pnand %p346, %p341
        %p348 = pneg %p347
        // Predicated region
        $region57: #{tpu_custom_call.1} parent=39 // pred_check
          _
        $region58: #{tpu_custom_call.1} parent=39 // pred_check_branch
          %350 = sbr.rel (%p347) target = $region60
        $region59: #{tpu_custom_call.1} parent=39 // pred_region
          %351 = vst [vmem:[#allocation3] sm:$0xf] 0
        $region60: #{tpu_custom_call.1} parent=39 // pred_fallthru
          _
        %v352 = vld [vmem:[#allocation2] sm:$0xff]
        %v353 = vld [vmem:[%s288] sm:$0xff]
        %v354 = vpack.c.bf16 %v353, %v353
        %v355 = vld [vmem:[%s297] sm:$0xf]
        %v356 = vld [vmem:[%s297 + $0x4] sm:$0xf]
        %v357 = vld [vmem:[%s297 + $0x8] sm:$0xf]
        %v358 = vld [vmem:[%s297 + $0xc] sm:$0xf]
        %v359 = vld [vmem:[%s297 + $0x10] sm:$0xf]
        %v360 = vld [vmem:[%s297 + $0x14] sm:$0xf]
        %v361 = vld [vmem:[%s297 + $0x18] sm:$0xf]
        %v362 = vld [vmem:[%s297 + $0x1c] sm:$0xf]
        %v363 = vld [vmem:[%s297 + $0x20] sm:$0xf]
        %v364 = vld [vmem:[%s297 + $0x24] sm:$0xf]
        %v365 = vld [vmem:[%s297 + $0x28] sm:$0xf]
        %v366 = vld [vmem:[%s297 + $0x2c] sm:$0xf]
        %v367 = vld [vmem:[%s297 + $0x30] sm:$0xf]
        %v368 = vld [vmem:[%s297 + $0x34] sm:$0xf]
        %v369 = vld [vmem:[%s297 + $0x38] sm:$0xf]
        %v370 = vld [vmem:[%s297 + $0x3c] sm:$0xf]
        %v387 = vunpack.c.l.b16 %v355
        %v388 = vunpack.c.l.b16 %v356
        %v389 = vunpack.c.l.b16 %v357
        %v390 = vunpack.c.l.b16 %v358
        %v391 = vunpack.c.l.b16 %v359
        %v392 = vunpack.c.l.b16 %v360
        %v393 = vunpack.c.l.b16 %v361
        %v394 = vunpack.c.l.b16 %v362
        %v395 = vunpack.c.l.b16 %v363
        %v396 = vunpack.c.l.b16 %v364
        %v397 = vunpack.c.l.b16 %v365
        %v398 = vunpack.c.l.b16 %v366
        %v399 = vunpack.c.l.b16 %v367
        %v400 = vunpack.c.l.b16 %v368
        %v401 = vunpack.c.l.b16 %v369
        %v402 = vunpack.c.l.b16 %v370
        %v403 = vpack.c.b16 %v388, %v387
        %v404 = vpack.c.b16 %v390, %v389
        %v405 = vpack.c.b16 %v392, %v391
        %v406 = vpack.c.b16 %v394, %v393
        %v407 = vpack.c.b16 %v396, %v395
        %v408 = vpack.c.b16 %v398, %v397
        %v409 = vpack.c.b16 %v400, %v399
        %v410 = vpack.c.b16 %v402, %v401
        %419 = vmatprep.subr.bf16.mxu0 0
        %420 = vmatpush1.bf16.msra.mxu0 %v403
        %421 = vmatprep.subr.bf16.mxu0 0
        %422 = vmatpush1.bf16.msra.mxu0 %v404
        %423 = vmatprep.subr.bf16.mxu0 0
        %424 = vmatpush1.bf16.msra.mxu0 %v405
        %425 = vmatprep.subr.bf16.mxu0 0
        %426 = vmatpush1.bf16.msra.mxu0 %v406
        %427 = vmatprep.subr.bf16.mxu0 0
        %428 = vmatpush1.bf16.msra.mxu0 %v407
        %429 = vmatprep.subr.bf16.mxu0 0
        %430 = vmatpush1.bf16.msra.mxu0 %v408
        %431 = vmatprep.subr.bf16.mxu0 0
        %432 = vmatpush1.bf16.msra.mxu0 %v409
        %433 = vmatprep.subr.bf16.mxu0 0
        %434 = vmatpush1.bf16.msra.mxu0 %v410
        %435 = vmatprep.subr.bf16.mxu0 0
        %436 = vmatpush1.bf16.msra.mxu0 0
        %437 = vmatprep.subr.bf16.mxu0 0
        %438 = vmatpush1.bf16.msra.mxu0 0
        %439 = vmatprep.subr.bf16.mxu0 0
        %440 = vmatpush1.bf16.msra.mxu0 0
        %441 = vmatprep.subr.bf16.mxu0 0
        %442 = vmatpush1.bf16.msra.mxu0 0
        %443 = vmatprep.subr.bf16.mxu0 0
        %444 = vmatpush1.bf16.msra.mxu0 0
        %445 = vmatprep.subr.bf16.mxu0 0
        %446 = vmatpush1.bf16.msra.mxu0 0
        %447 = vmatprep.subr.bf16.mxu0 0
        %448 = vmatpush1.bf16.msra.mxu0 0
        %449 = vmatprep.subr.bf16.mxu0 0
        %450 = vmatpush1.bf16.msra.mxu0 0
        %451 = vmatprep.mubr.bf16.mxu0 0
        %452 = vmatmul.mubr.bf16.gmra.mrb[0].mxu0 %v354
        %v453 = vpop.f32.mrb[0].mxu0
        %v454 = vadd.f32 0.0, %v453
        %v455 = vpop.f32.mrb[0].mxu0
        %v456 = vpop.f32.mrb[0].mxu0
        %v457 = vpop.f32.mrb[0].mxu0
        %458 = vdwg.mxu0
        %v459 = vadd.f32 %v352, %v454
        %460 = vst [vmem:[#allocation2] sm:$0xff] %v459
        %p461 = scmp.eq.s32.totalorder %s32, 1
        // Predicated region
        $region61: #{tpu_custom_call.1} parent=39 // pred_check
          %p462 = pneg %p461
        $region62: #{tpu_custom_call.1} parent=39 // pred_check_branch
          %464 = sbr.rel (%p462) target = $region64
        $region63: #{tpu_custom_call.1} parent=39 // pred_region
          %v465 = vld [vmem:[#allocation2] sm:$0xff]
          %v466 = vld [vmem:[%s339] sm:$0x1]
          %v468 = vlaneseq
          %v469 = vshrl.u32 %v468, 7
          %v470 = vsub.s32 0, %v469
          %v471 = vrot.slane %v466, %v470
          %v473 = vadd.f32 %v465, %v471
          %v474 = vmax.f32 %v473, 0.0
          %v475 = vld [vmem:[#allocation3] sm:$0xf]
          %v476 = vpack.c.bf16 %v474, %v474
          %v477 = vmax.bf16 %v475, %v476
          %478 = vst [vmem:[#allocation3] sm:$0xf] %v477
          %p479 = scmp.eq.s32.totalorder %s31, 3
          // Predicated region
          $region65: #{tpu_custom_call.1} parent=63 // pred_check
            %p480 = pneg %p479
          $region66: #{tpu_custom_call.1} parent=63 // pred_check_branch
            %482 = sbr.rel (%p480) target = $region68
          $region67: #{tpu_custom_call.1} parent=63 // pred_region
            %v483 = vld [vmem:[#allocation3] sm:$0xf]
            %v484 = vld [vmem:[#allocation9] sm:$0xf]
            %v485 = vld [vmem:[#allocation9 + $0x4] sm:$0xf]
            %v486 = vld [vmem:[#allocation9 + $0x8] sm:$0xf]
            %v487 = vld [vmem:[#allocation9 + $0xc] sm:$0xf]
            %v488 = vld [vmem:[#allocation9 + $0x10] sm:$0xf]
            %v489 = vld [vmem:[#allocation9 + $0x14] sm:$0xf]
            %v490 = vld [vmem:[#allocation9 + $0x18] sm:$0xf]
            %v491 = vld [vmem:[#allocation9 + $0x1c] sm:$0xf]
            %v492 = vld [vmem:[#allocation9 + $0x20] sm:$0xf]
            %v493 = vld [vmem:[#allocation9 + $0x24] sm:$0xf]
            %v494 = vld [vmem:[#allocation9 + $0x28] sm:$0xf]
            %v495 = vld [vmem:[#allocation9 + $0x2c] sm:$0xf]
            %v496 = vld [vmem:[#allocation9 + $0x30] sm:$0xf]
            %v497 = vld [vmem:[#allocation9 + $0x34] sm:$0xf]
            %v498 = vld [vmem:[#allocation9 + $0x38] sm:$0xf]
            %v499 = vld [vmem:[#allocation9 + $0x3c] sm:$0xf]
            %v500 = vld [vmem:[%s4] sm:$0x1]
            %v502 = vlaneseq
            %v503 = vshrl.u32 %v502, 7
            %v504 = vsub.s32 0, %v503
            %v505 = vrot.slane %v500, %v504
            %v523 = vunpack.c.l.b16 %v484
            %v524 = vunpack.c.l.b16 %v485
            %v525 = vunpack.c.l.b16 %v486
            %v526 = vunpack.c.l.b16 %v487
            %v527 = vunpack.c.l.b16 %v488
            %v528 = vunpack.c.l.b16 %v489
            %v529 = vunpack.c.l.b16 %v490
            %v530 = vunpack.c.l.b16 %v491
            %v531 = vunpack.c.l.b16 %v492
            %v532 = vunpack.c.l.b16 %v493
            %v533 = vunpack.c.l.b16 %v494
            %v534 = vunpack.c.l.b16 %v495
            %v535 = vunpack.c.l.b16 %v496
            %v536 = vunpack.c.l.b16 %v497
            %v537 = vunpack.c.l.b16 %v498
            %v538 = vunpack.c.l.b16 %v499
            %v539 = vpack.c.b16 %v524, %v523
            %v540 = vpack.c.b16 %v526, %v525
            %v541 = vpack.c.b16 %v528, %v527
            %v542 = vpack.c.b16 %v530, %v529
            %v543 = vpack.c.b16 %v532, %v531
            %v544 = vpack.c.b16 %v534, %v533
            %v545 = vpack.c.b16 %v536, %v535
            %v546 = vpack.c.b16 %v538, %v537
            %555 = vmatprep.subr.bf16.mxu0 0
            %556 = vmatpush1.bf16.msra.mxu0 %v539
            %557 = vmatprep.subr.bf16.mxu0 0
            %558 = vmatpush1.bf16.msra.mxu0 %v540
            %559 = vmatprep.subr.bf16.mxu0 0
            %560 = vmatpush1.bf16.msra.mxu0 %v541
            %561 = vmatprep.subr.bf16.mxu0 0
            %562 = vmatpush1.bf16.msra.mxu0 %v542
            %563 = vmatprep.subr.bf16.mxu0 0
            %564 = vmatpush1.bf16.msra.mxu0 %v543
            %565 = vmatprep.subr.bf16.mxu0 0
            %566 = vmatpush1.bf16.msra.mxu0 %v544
            %567 = vmatprep.subr.bf16.mxu0 0
            %568 = vmatpush1.bf16.msra.mxu0 %v545
            %569 = vmatprep.subr.bf16.mxu0 0
            %570 = vmatpush1.bf16.msra.mxu0 %v546
            %571 = vmatprep.subr.bf16.mxu0 0
            %572 = vmatpush1.bf16.msra.mxu0 0
            %573 = vmatprep.subr.bf16.mxu0 0
            %574 = vmatpush1.bf16.msra.mxu0 0
            %575 = vmatprep.subr.bf16.mxu0 0
            %576 = vmatpush1.bf16.msra.mxu0 0
            %577 = vmatprep.subr.bf16.mxu0 0
            %578 = vmatpush1.bf16.msra.mxu0 0
            %579 = vmatprep.subr.bf16.mxu0 0
            %580 = vmatpush1.bf16.msra.mxu0 0
            %581 = vmatprep.subr.bf16.mxu0 0
            %582 = vmatpush1.bf16.msra.mxu0 0
            %583 = vmatprep.subr.bf16.mxu0 0
            %584 = vmatpush1.bf16.msra.mxu0 0
            %585 = vmatprep.subr.bf16.mxu0 0
            %586 = vmatpush1.bf16.msra.mxu0 0
            %587 = vmatprep.mubr.bf16.mxu0 0
            %588 = vmatmul.mubr.bf16.gmra.mrb[0].mxu0 %v483
            %v589 = vpop.f32.mrb[0].mxu0
            %v590 = vadd.f32 %v505, %v589
            %v591 = vpop.f32.mrb[0].mxu0
            %v592 = vpop.f32.mrb[0].mxu0
            %v593 = vpop.f32.mrb[0].mxu0
            %594 = vdwg.mxu0
            %v595 = vmax.f32 %v590, 0.0
            %596 = vst [vmem:[%s335] sm:$0xff] %v595
          $region68: #{tpu_custom_call.1} parent=63 // pred_fallthru
            _
        $region64: #{tpu_custom_call.1} parent=39 // pred_fallthru
          _
        %s597 = sand.u32 %s178, 1
        %s598 = scalar_lea.sflag [#allocation6], %s597
        %s599 = sand.u32 %s178, 1
        %s600 = smul.addr %s599, 8
        %s601 = scalar_lea.vmem [#allocation10], %s600
        // Predicated region
        $region69: #{tpu_custom_call.1} parent=39 // pred_check
          %p602 = pneg %p188
        $region70: #{tpu_custom_call.1} parent=39 // pred_check_branch
          %604 = sbr.rel (%p602) target = $region72
        $region71: #{tpu_custom_call.1} parent=39 // pred_region
          %s606 = ssub.s32 128, 128
          %607 = vsyncadd %s598, %s606
          %s608 = smul.addr %s30, 128
          %s609 = scalar_lea.hbm %s5, %s608
          %s611 = sshll.u32 %s601, 4
          %s612 = int_to_ptr.vmem [resolvable:$true] %s611
          %614 = dma.vmem_to_hbm [thread:$0]  %s612, 128, %s609, %s598
        $region72: #{tpu_custom_call.1} parent=39 // pred_fallthru
          _
      $region40: #{tpu_custom_call.1} parent=5 // pred_fallthru
        _
      %p615 = scmp.le.s32.totalorder 2, %s20
      // Predicated region
      $region73: #{tpu_custom_call.1} parent=5 // pred_check
        %p616 = pneg %p615
      $region74: #{tpu_custom_call.1} parent=5 // pred_check_branch
        %618 = sbr.rel (%p616) target = $region76
      $region75: #{tpu_custom_call.1} parent=5 // pred_region
        %s619 = ssub.s32 %s20, 2
        // Predicated region
        $region77: #{tpu_custom_call.1} parent=75 // pred_check
          %p620 = pneg %p194
        $region78: #{tpu_custom_call.1} parent=75 // pred_check_branch
          %622 = sbr.rel (%p620) target = $region80
        $region79: #{tpu_custom_call.1} parent=75 // pred_region
          %s623 = sand.u32 %s179, 1
          %s624 = scalar_lea.sflag [#allocation6], %s623
          %s625 = sand.u32 %s179, 1
          %s626 = smul.addr %s625, 8
          %s627 = scalar_lea.vmem [#allocation10], %s626
          %628 = dma.done %s624, 128
        $region80: #{tpu_custom_call.1} parent=75 // pred_fallthru
          _
      $region76: #{tpu_custom_call.1} parent=5 // pred_fallthru
        _
    $region6: #{tpu_custom_call.1} parent=1 // loop_footer
      %s24 = sadd.s32 1, %s20
    $region7: #{tpu_custom_call.1} parent=1 // loop_footer_branch
      %19 = sbr.rel target = $region3
    $region8: #{tpu_custom_call.1} parent=1 // loop_exit
      _
    %629 = vsyncpa [#allocation5], 1
    %s630 = scalar_lea.sflag [#allocation5], 1
    %631 = vsyncpa %s630, 1
    %632 = vsyncpa [#allocation8], 1
    %s633 = scalar_lea.sflag [#allocation8], 1
    %634 = vsyncpa %s633, 1
    %635 = vsyncpa [#allocation6], 1
    %s636 = scalar_lea.sflag [#allocation6], 1
    %637 = vsyncpa %s636, 1

</llo_original>
